<compile_context>
chip_gen: v7x
topology: tpu7x:2x2x1
jax: 0.10.0
libtpu: 0.0.40
codegen_flags: <defaults>
</compile_context>

<pallas_src>
import jax
import jax.numpy as jnp
from jax.experimental import pallas as pl
from jax.experimental.pallas import tpu as pltpu

_LANE = 128


def _round_up(n, m):
    return ((n + m - 1) // m) * m


def _hvae_loss_kernel(x_ref, xhat_ref, lat_ref, out_ref):
    p = pl.program_id(0)   # parallel (per-core) axis
    k = pl.program_id(1)   # reduction axis (last)

    # Init this split's partial-sum tile at the first reduction step.
    @pl.when(k == 0)
    def _init():
        out_ref[...] = jnp.zeros_like(out_ref)

    # Tiny KL terms, folded into a single lane-dense (3, L) slab:
    # row 0 = mu, row 1 = sigma, row 2 = z-offset (0 for level-2 entries).
    # Added exactly once (split 0, first step). Padding (sigma=1, mu=z=0)
    # contributes exactly 0.
    @pl.when(jnp.logical_and(p == 0, k == 0))
    def _kl():
        lat = lat_ref[...]
        mu = lat[0:1, :]
        sig = lat[1:2, :]
        z = lat[2:3, :]
        sig_sq = sig * sig
        dz = mu - z
        kl = -jnp.sum(1.0 + jnp.log(sig_sq) - dz * dz - sig_sq)
        out_ref[...] += kl

    # Streaming SSE over the recon tensors (dominant term, HBM-bound).
    d = xhat_ref[...] - x_ref[...]
    out_ref[...] += jnp.sum(d * d)


def hierarchical_vae_loss(x, mu1, sigma1, x_hat, mu2, sigma2, z_hat,
                          *, max_block_rows=2048):
    """Matches HierarchicalVAELoss.forward: (L1 + L2 + L3) / batch_size."""
    batch_size = x.shape[0]
    n = int(x.size)
    assert int(x_hat.size) == n

    # ---- recon stream: flatten to a lane/sublane-dense (rows, 128) slab ----
    xf = x.reshape(-1).astype(jnp.float32)
    xhf = x_hat.reshape(-1).astype(jnp.float32)

    rows = pl.cdiv(n, _LANE)
    max_block_rows = max(8, _round_up(max_block_rows, 8))
    block_rows = min(max_block_rows, _round_up(rows, 8))        # multiple of 8
    num_blocks = pl.cdiv(rows, block_rows)
    num_parallel = 2 if num_blocks >= 2 else 1                  # v7x megacore split
    blocks_per_split = pl.cdiv(num_blocks, num_parallel)
    padded_rows = num_parallel * blocks_per_split * block_rows
    padded_n = padded_rows * _LANE

    pad = padded_n - n
    xf = jnp.pad(xf, (0, pad))          # zero padding -> diff = 0 -> SSE += 0
    xhf = jnp.pad(xhf, (0, pad))
    x2 = xf.reshape(padded_rows, _LANE)
    xh2 = xhf.reshape(padded_rows, _LANE)

    # ---- pack the tiny KL inputs into one lane-multiple-of-128 slab ----
    mu_all = jnp.concatenate(
        [mu2.reshape(-1), mu1.reshape(-1)]).astype(jnp.float32)
    sig_all = jnp.concatenate(
        [sigma2.reshape(-1), sigma1.reshape(-1)]).astype(jnp.float32)
    z_all = jnp.concatenate(
        [jnp.zeros((int(mu2.size),), jnp.float32),
         z_hat.reshape(-1).astype(jnp.float32)])
    l_lat = int(mu_all.size)
    l_pad = _round_up(l_lat, _LANE)
    mu_all = jnp.pad(mu_all, (0, l_pad - l_lat))                       # mu = 0
    z_all = jnp.pad(z_all, (0, l_pad - l_lat))                         # z = 0
    sig_all = jnp.pad(sig_all, (0, l_pad - l_lat), constant_values=1.0)  # sigma = 1
    lat = jnp.stack([mu_all, sig_all, z_all])                          # (3, l_pad)

    bps = blocks_per_split
    recon_map = lambda p, k: (p * bps + k, 0)

    cost = pl.CostEstimate(
        flops=3 * padded_n + 7 * l_pad,
        transcendentals=l_pad,
        bytes_accessed=2 * 4 * padded_n + 3 * 4 * l_pad + 4 * num_parallel * 8 * _LANE,
    )

    out = pl.pallas_call(
        _hvae_loss_kernel,
        out_shape=jax.ShapeDtypeStruct((num_parallel * 8, _LANE), jnp.float32),
        grid_spec=pltpu.PrefetchScalarGridSpec(
            num_scalar_prefetch=0,
            grid=(num_parallel, blocks_per_split),
            in_specs=[
                pl.BlockSpec((block_rows, _LANE), recon_map),
                pl.BlockSpec((block_rows, _LANE), recon_map),
                pl.BlockSpec((3, l_pad), lambda p, k: (0, 0)),
            ],
            out_specs=pl.BlockSpec((8, _LANE), lambda p, k: (p, 0)),
        ),
        compiler_params=pltpu.CompilerParams(
            dimension_semantics=("parallel", "arbitrary")),
        cost_estimate=cost,
    )(x2, xh2, lat)

    # Each (8, 128) output tile holds its split's partial sum broadcast; take
    # one element per split, sum, and apply the 1/batch_size scale outside.
    partials = out[::8, 0]
    return jnp.sum(partials) / batch_size


def _reference(x, mu1, sigma1, x_hat, mu2, sigma2, z_hat):
    b = x.shape[0]
    l1 = jnp.sum((x_hat - x) ** 2)
    l2 = -jnp.sum(1 + jnp.log(sigma2 ** 2) - mu2 ** 2 - sigma2 ** 2)
    l3 = -jnp.sum(1 + jnp.log(sigma1 ** 2) - (mu1 - z_hat) ** 2 - sigma1 ** 2)
    return (l1 + l2 + l3) / b


if __name__ == "__main__":
    key = jax.random.PRNGKey(0)
    kx, kxh, km1, ks1, km2, ks2, kz = jax.random.split(key, 7)

    B, C, H, W = 2, 4, 16, 16   # recon tensors (NCHW)
    D1, D2 = 32, 16             # hierarchical latent dims

    x = jax.random.normal(kx, (B, C, H, W), dtype=jnp.float32)
    x_hat = jax.random.normal(kxh, (B, C, H, W), dtype=jnp.float32)
    mu1 = jax.random.normal(km1, (B, D1), dtype=jnp.float32)
    sigma1 = jax.random.uniform(ks1, (B, D1), dtype=jnp.float32,
                                minval=0.1, maxval=1.5)
    mu2 = jax.random.normal(km2, (B, D2), dtype=jnp.float32)
    sigma2 = jax.random.uniform(ks2, (B, D2), dtype=jnp.float32,
                                minval=0.1, maxval=1.5)
    z_hat = jax.random.normal(kz, (B, D1), dtype=jnp.float32)

    loss = hierarchical_vae_loss(x, mu1, sigma1, x_hat, mu2, sigma2, z_hat)
    loss = jax.block_until_ready(loss)
    ref = _reference(x, mu1, sigma1, x_hat, mu2, sigma2, z_hat)
    assert jnp.allclose(loss, ref, rtol=1e-5, atol=1e-4), (loss, ref)

    # Second case: small tile cap forces a multi-block reduction grid plus the
    # 2-way parallel split, exercising the pipelined / megacore code path.
    B2, C2, H2, W2 = 2, 4, 32, 32
    x_b = jax.random.normal(kx, (B2, C2, H2, W2), dtype=jnp.float32)
    xh_b = jax.random.normal(kxh, (B2, C2, H2, W2), dtype=jnp.float32)
    loss_b = hierarchical_vae_loss(x_b, mu1, sigma1, xh_b, mu2, sigma2, z_hat,
                                   max_block_rows=16)
    loss_b = jax.block_until_ready(loss_b)
    ref_b = _reference(x_b, mu1, sigma1, xh_b, mu2, sigma2, z_hat)
    assert jnp.allclose(loss_b, ref_b, rtol=1e-5, atol=1e-4), (loss_b, ref_b)

    print("KERNEL_OK")
</pallas_src>

<mosaic_0001>
module attributes {stable_mosaic.version = 11 : i64} {
  func.func @_hvae_loss_kernel(%arg0: i32, %arg1: i32, %arg2: memref<16x128xf32, #tpu.memory_space<vmem>>, %arg3: memref<16x128xf32, #tpu.memory_space<vmem>>, %arg4: memref<3x128xf32, #tpu.memory_space<vmem>>, %arg5: memref<8x128xf32, #tpu.memory_space<vmem>>) attributes {dimension_semantics = [#tpu.dimension_semantics<parallel>, #tpu.dimension_semantics<arbitrary>], iteration_bounds = array<i64: 1, 1>, scalar_prefetch = 0 : i64, scratch_operands = 0 : i64, tpu.core_type = #tpu.core_type<tc>, window_params = [{transform_indices = @transform_0, window_bounds = array<i64: 16, 128>}, {transform_indices = @transform_1, window_bounds = array<i64: 16, 128>}, {pipeline_mode = #tpu.pipeline_mode<synchronous>, transform_indices = @transform_2, window_bounds = array<i64: 3, 128>}, {transform_indices = @transform_3, window_bounds = array<i64: 8, 128>}]} {
    %c0_i32 = arith.constant 0 : i32
    %0 = arith.cmpi eq, %arg1, %c0_i32 : i32
    %1 = arith.extui %0 : i1 to i32
    %c0_i32_0 = arith.constant 0 : i32
    %2 = arith.cmpi ne, %1, %c0_i32_0 : i32
    scf.if %2 {
      %cst_11 = arith.constant 0.000000e+00 : f32
      %20 = vector.broadcast %cst_11 : f32 to vector<8x128xf32>
      %c0_12 = arith.constant 0 : index
      %c0_13 = arith.constant 0 : index
      %21 = vector.load %arg5[%c0_12, %c0_13] : memref<8x128xf32, #tpu.memory_space<vmem>>, vector<8x128xf32>
      tpu.vector_store %arg5[%c0_12, %c0_13], %20 {strides = array<i32>} : memref<8x128xf32, #tpu.memory_space<vmem>>, vector<8x128xf32>,
    } else {
    }
    %c0_i32_1 = arith.constant 0 : i32
    %3 = arith.cmpi eq, %arg0, %c0_i32_1 : i32
    %c0_i32_2 = arith.constant 0 : i32
    %4 = arith.cmpi eq, %arg1, %c0_i32_2 : i32
    %5 = arith.andi %3, %4 : i1
    %6 = arith.extui %5 : i1 to i32
    %c0_i32_3 = arith.constant 0 : i32
    %7 = arith.cmpi ne, %6, %c0_i32_3 : i32
    scf.if %7 {
      %c0_11 = arith.constant 0 : index
      %c0_12 = arith.constant 0 : index
      %20 = vector.load %arg4[%c0_11, %c0_12] : memref<3x128xf32, #tpu.memory_space<vmem>>, vector<3x128xf32>
      %21 = vector.extract_strided_slice %20 {offsets = [0, 0], sizes = [1, 128], strides = [1, 1]} : vector<3x128xf32> to vector<1x128xf32>
      %22 = vector.extract_strided_slice %20 {offsets = [1, 0], sizes = [1, 128], strides = [1, 1]} : vector<3x128xf32> to vector<1x128xf32>
      %23 = vector.extract_strided_slice %20 {offsets = [2, 0], sizes = [1, 128], strides = [1, 1]} : vector<3x128xf32> to vector<1x128xf32>
      %24 = arith.mulf %22, %22 : vector<1x128xf32>
      %25 = arith.subf %21, %23 : vector<1x128xf32>
      %26 = math.log %24 : vector<1x128xf32>
      %cst_13 = arith.constant 1.000000e+00 : f32
      %27 = vector.broadcast %cst_13 : f32 to vector<1x128xf32>
      %28 = arith.addf %27, %26 : vector<1x128xf32>
      %29 = arith.mulf %25, %25 : vector<1x128xf32>
      %30 = arith.subf %28, %29 : vector<1x128xf32>
      %31 = arith.subf %30, %24 : vector<1x128xf32>
      %32 = vector.shape_cast %31 : vector<1x128xf32> to vector<1x1x128xf32>
      %cst_14 = arith.constant dense<0.000000e+00> : vector<1xf32>
      %33 = vector.multi_reduction <add>, %32, %cst_14 [1, 2] : vector<1x1x128xf32> to vector<1xf32>
      %34 = vector.shape_cast %33 : vector<1xf32> to vector<1x1x1xf32>
      %35 = vector.extract %34[0, 0, 0] : f32 from vector<1x1x1xf32>
      %cst_15 = arith.constant 0.000000e+00 : f32
      %36 = arith.subf %cst_15, %35 : f32
      %c0_16 = arith.constant 0 : index
      %c0_17 = arith.constant 0 : index
      %37 = vector.load %arg5[%c0_16, %c0_17] : memref<8x128xf32, #tpu.memory_space<vmem>>, vector<8x128xf32>
      %38 = vector.broadcast %36 : f32 to vector<8x128xf32>
      %39 = arith.addf %37, %38 : vector<8x128xf32>
      %c0_18 = arith.constant 0 : index
      %c0_19 = arith.constant 0 : index
      %40 = vector.load %arg5[%c0_18, %c0_19] : memref<8x128xf32, #tpu.memory_space<vmem>>, vector<8x128xf32>
      tpu.vector_store %arg5[%c0_18, %c0_19], %39 {strides = array<i32>} : memref<8x128xf32, #tpu.memory_space<vmem>>, vector<8x128xf32>,
    } else {
    }
    %c0 = arith.constant 0 : index
    %c0_4 = arith.constant 0 : index
    %8 = vector.load %arg3[%c0, %c0_4] : memref<16x128xf32, #tpu.memory_space<vmem>>, vector<16x128xf32>
    %c0_5 = arith.constant 0 : index
    %c0_6 = arith.constant 0 : index
    %9 = vector.load %arg2[%c0_5, %c0_6] : memref<16x128xf32, #tpu.memory_space<vmem>>, vector<16x128xf32>
    %10 = arith.subf %8, %9 : vector<16x128xf32>
    %c0_7 = arith.constant 0 : index
    %c0_8 = arith.constant 0 : index
    %11 = vector.load %arg5[%c0_7, %c0_8] : memref<8x128xf32, #tpu.memory_space<vmem>>, vector<8x128xf32>
    %12 = arith.mulf %10, %10 : vector<16x128xf32>
    %13 = vector.shape_cast %12 : vector<16x128xf32> to vector<1x16x128xf32>
    %cst = arith.constant dense<0.000000e+00> : vector<1xf32>
    %14 = vector.multi_reduction <add>, %13, %cst [1, 2] : vector<1x16x128xf32> to vector<1xf32>
    %15 = vector.shape_cast %14 : vector<1xf32> to vector<1x1x1xf32>
    %16 = vector.extract %15[0, 0, 0] : f32 from vector<1x1x1xf32>
    %17 = vector.broadcast %16 : f32 to vector<8x128xf32>
    %18 = arith.addf %11, %17 : vector<8x128xf32>
    %c0_9 = arith.constant 0 : index
    %c0_10 = arith.constant 0 : index
    %19 = vector.load %arg5[%c0_9, %c0_10] : memref<8x128xf32, #tpu.memory_space<vmem>>, vector<8x128xf32>
    tpu.vector_store %arg5[%c0_9, %c0_10], %18 {strides = array<i32>} : memref<8x128xf32, #tpu.memory_space<vmem>>, vector<8x128xf32>,
    return
  }
  func.func @transform_0(%arg0: i32, %arg1: i32) -> (i32, i32) {
    %c1_i32 = arith.constant 1 : i32
    %0 = arith.muli %arg0, %c1_i32 : i32
    %1 = arith.addi %0, %arg1 : i32
    %c0_i32 = arith.constant 0 : i32
    %c0_i32_0 = arith.constant 0 : i32
    return %1, %c0_i32 : i32, i32
  }
  func.func @transform_1(%arg0: i32, %arg1: i32) -> (i32, i32) {
    %c1_i32 = arith.constant 1 : i32
    %0 = arith.muli %arg0, %c1_i32 : i32
    %1 = arith.addi %0, %arg1 : i32
    %c0_i32 = arith.constant 0 : i32
    %c0_i32_0 = arith.constant 0 : i32
    return %1, %c0_i32 : i32, i32
  }
  func.func @transform_2(%arg0: i32, %arg1: i32) -> (i32, i32) {
    %c0_i32 = arith.constant 0 : i32
    %c0_i32_0 = arith.constant 0 : i32
    %c0_i32_1 = arith.constant 0 : i32
    return %c0_i32, %c0_i32_0 : i32, i32
  }
  func.func @transform_3(%arg0: i32, %arg1: i32) -> (i32, i32) {
    %c0_i32 = arith.constant 0 : i32
    %c0_i32_0 = arith.constant 0 : i32
    return %arg0, %c0_i32 : i32, i32
  }
}

</mosaic_0001>

<llo_original>
// kernel: tpu_custom_call.1
$region0: #{tpu_custom_call.1}
  #allocation0 [shape = 'u32[]', space=smem, size = 0x4, offset = 0x4, fixed_abs, tag = 'smem constant byte address 0x4 - core index']
  #allocation1 [shape = 'u32[144,128]{1,0:T(1,128)}', space=vmem, size = 0x12000, scoped, tag = 'internal scratch']
  %s0 = inlined_call_operand.hbm [shape: f32[16,128], index: 0, kind: input, shape index: {}]
  %s1 = inlined_call_operand.hbm [shape: f32[16,128], index: 1, kind: input, shape index: {}]
  %s2 = inlined_call_operand.vmem [shape: f32[3,128], index: 2, kind: input, shape index: {}]
  %s3 = inlined_call_operand.hbm [shape: f32[8,128], index: 3, kind: output, shape index: {}]
  %s4 = sld [smem:[#allocation0]]
  $region38: #{tpu_custom_call.1} parent=0
    _
  %s6 = ssub.s32 1, %s4
  %s7 = scalar_select 0, %s6, %s4
  $region1: #{tpu_custom_call.1} parent=0
    #allocation2 [shape = 'u8[8192]{0}', space=vmem, size = 0x2000, scoped, tag = 'input window, operand 0, single buffered']
    #allocation3 [shape = 's32[1]{0}', space=sflag, size = 0x4, scoped, tag = 'scoped memory for tpu_custom_call.1']
    #allocation4 [shape = 's32[1]{0}', space=sflag, size = 0x4, scoped, tag = 'scoped memory for tpu_custom_call.1']
    #allocation5 [shape = 'u8[8192]{0}', space=vmem, size = 0x2000, scoped, tag = 'input window, operand 1, single buffered']
    #allocation6 [shape = 's32[1]{0}', space=sflag, size = 0x4, scoped, tag = 'scoped memory for tpu_custom_call.1']
    #allocation7 [shape = 'u8[4096]{0}', space=vmem, size = 0x1000, scoped, tag = 'output window, operand 0, single buffered']
    %8 = vsyncpa [#allocation3], 0
    %9 = vsyncpa [#allocation6], 0
    %10 = vsyncpa [#allocation4], 0
    // Predicated region
    $region2: #{tpu_custom_call.1} parent=1 // pred_check
      _
    $region3: #{tpu_custom_call.1} parent=1 // pred_check_branch
      %12 = sbr.rel (0) target = $region5
    $region4: #{tpu_custom_call.1} parent=1 // pred_region
      %s13 = sadd.s32 0, 0
      %s14 = smul.u32 2, %s13
      %s16 = ssub.s32 256, 256
      %17 = vsyncadd [#allocation3], %s16
      %s18 = smul.addr %s14, 128
      %s19 = scalar_lea.hbm %s0, %s18
      %s20 = sshll.u32 [#allocation2], 4
      %s21 = int_to_ptr.vmem [resolvable:$true] %s20
      %26 = dma.hbm_to_vmem [thread:$0]  %s19, 256, %s21, [#allocation3], 128, 128, 8
    $region5: #{tpu_custom_call.1} parent=1 // pred_fallthru
      _
    // Predicated region
    $region6: #{tpu_custom_call.1} parent=1 // pred_check
      _
    $region7: #{tpu_custom_call.1} parent=1 // pred_check_branch
      %28 = sbr.rel (0) target = $region9
    $region8: #{tpu_custom_call.1} parent=1 // pred_region
      %s29 = sadd.s32 0, 0
      %s30 = smul.u32 2, %s29
      %s32 = ssub.s32 256, 256
      %33 = vsyncadd [#allocation6], %s32
      %s34 = smul.addr %s30, 128
      %s35 = scalar_lea.hbm %s1, %s34
      %s36 = sshll.u32 [#allocation5], 4
      %s37 = int_to_ptr.vmem [resolvable:$true] %s36
      %42 = dma.hbm_to_vmem [thread:$0]  %s35, 256, %s37, [#allocation6], 128, 128, 8
    $region9: #{tpu_custom_call.1} parent=1 // pred_fallthru
      _
    // Predicated region
    $region10: #{tpu_custom_call.1} parent=1 // pred_check
      _
    $region11: #{tpu_custom_call.1} parent=1 // pred_check_branch
      %44 = sbr.rel (0) target = $region13
    $region12: #{tpu_custom_call.1} parent=1 // pred_region
      _
    $region13: #{tpu_custom_call.1} parent=1 // pred_fallthru
      _
    // Predicated region
    $region14: #{tpu_custom_call.1} parent=1 // pred_check
      _
    $region15: #{tpu_custom_call.1} parent=1 // pred_check_branch
      %46 = sbr.rel (0) target = $region17
    $region16: #{tpu_custom_call.1} parent=1 // pred_region
      %47 = dma.done [#allocation3], 256
    $region17: #{tpu_custom_call.1} parent=1 // pred_fallthru
      _
    // Predicated region
    $region18: #{tpu_custom_call.1} parent=1 // pred_check
      _
    $region19: #{tpu_custom_call.1} parent=1 // pred_check_branch
      %49 = sbr.rel (0) target = $region21
    $region20: #{tpu_custom_call.1} parent=1 // pred_region
      %50 = dma.done [#allocation6], 256
    $region21: #{tpu_custom_call.1} parent=1 // pred_fallthru
      _
    %s51 = sadd.s32 0, 0
    %s52 = smul.u32 2, %s51
    %s53 = sadd.s32 0, 0
    %s54 = smul.u32 2, %s53
    %p55 = scmp.eq.s32.totalorder 0, 0
    // Predicated region
    $region22: #{tpu_custom_call.1} parent=1 // pred_check
      %p56 = pneg %p55
    $region23: #{tpu_custom_call.1} parent=1 // pred_check_branch
      %58 = sbr.rel (%p56) target = $region25
    $region24: #{tpu_custom_call.1} parent=1 // pred_region
      %59 = vst [vmem:[#allocation7] sm:$0xff] 0.0
    $region25: #{tpu_custom_call.1} parent=1 // pred_fallthru
      _
    %p60 = scmp.eq.s32.totalorder 0, 0
    %p61 = pnand %p60, %p55
    %p62 = pneg %p61
    // Predicated region
    $region26: #{tpu_custom_call.1} parent=1 // pred_check
      _
    $region27: #{tpu_custom_call.1} parent=1 // pred_check_branch
      %64 = sbr.rel (%p61) target = $region29
    $region28: #{tpu_custom_call.1} parent=1 // pred_region
      %v65 = vld [vmem:[%s2] sm:$0x7]
      %v66 = vmul.f32 %v65, %v65
      %v68 = vrot.slane %v65, 2
      %v70 = vsub.f32 %v65, %v68
      %v71 = vlog2.pop %v66
      %v72 = vmul.f32 %v71, 0.6931472
      %v73 = vadd.f32 %v72, 1.0
      %v74 = vmul.f32 %v70, %v70
      %v76 = vrot.slane %v74, 7
      %v78 = vsub.f32 %v73, %v76
      %v79 = vsub.f32 %v78, %v66
      %v81 = vrot.slane %v79, 1
      %vm83 = vcmask 1040384
      %v84 = vsel %vm83, %v81, 0.0
      %85 = vadd.xlane.f32.xlu0 %v84
      %v86 = vpop.xlane.xlu0 %85
      %v87 = vrot.slane %v86, 4
      %v88 = vadd.f32 %v86, %v87
      %v89 = vrot.slane %v88, 2
      %v90 = vadd.f32 %v88, %v89
      %v91 = vrot.slane %v90, 1
      %v92 = vadd.f32 %v90, %v91
      %s93 = vtos %v92
      %s94 = ssub.f32 0.0, %s93
      %v95 = vld [vmem:[#allocation7] sm:$0xff]
      %v96 = vstv %s94
      %v97 = vadd.f32 %v95, %v96
      %98 = vst [vmem:[#allocation7] sm:$0xff] %v97
    $region29: #{tpu_custom_call.1} parent=1 // pred_fallthru
      _
    %v99 = vld [vmem:[#allocation5] sm:$0xff]
    %v100 = vld [vmem:[#allocation5 + $0x8] sm:$0xff]
    %v101 = vld [vmem:[#allocation2] sm:$0xff]
    %v102 = vld [vmem:[#allocation2 + $0x8] sm:$0xff]
    %v103 = vsub.f32 %v99, %v101
    %v104 = vsub.f32 %v100, %v102
    %v105 = vld [vmem:[#allocation7] sm:$0xff]
    %v106 = vmul.f32 %v103, %v103
    %v107 = vmul.f32 %v104, %v104
    %v108 = vadd.f32 %v106, %v107
    %109 = vadd.xlane.f32.xlu0 %v108
    %v110 = vpop.xlane.xlu0 %109
    %v111 = vrot.slane %v110, 4
    %v112 = vadd.f32 %v110, %v111
    %v113 = vrot.slane %v112, 2
    %v114 = vadd.f32 %v112, %v113
    %v115 = vrot.slane %v114, 1
    %v116 = vadd.f32 %v114, %v115
    %s117 = vtos %v116
    %v118 = vstv %s117
    %v119 = vadd.f32 %v105, %v118
    %120 = vst [vmem:[#allocation7] sm:$0xff] %v119
    // Predicated region
    $region30: #{tpu_custom_call.1} parent=1 // pred_check
      _
    $region31: #{tpu_custom_call.1} parent=1 // pred_check_branch
      %122 = sbr.rel (0) target = $region33
    $region32: #{tpu_custom_call.1} parent=1 // pred_region
      %s124 = ssub.s32 128, 128
      %125 = vsyncadd [#allocation4], %s124
      %s127 = sshll.u32 [#allocation7], 4
      %s128 = int_to_ptr.vmem [resolvable:$true] %s127
      %130 = dma.vmem_to_hbm [thread:$0]  %s128, 128, %s3, [#allocation4]
    $region33: #{tpu_custom_call.1} parent=1 // pred_fallthru
      _
    // Predicated region
    $region34: #{tpu_custom_call.1} parent=1 // pred_check
      _
    $region35: #{tpu_custom_call.1} parent=1 // pred_check_branch
      %132 = sbr.rel (0) target = $region37
    $region36: #{tpu_custom_call.1} parent=1 // pred_region
      %133 = dma.done [#allocation4], 128
    $region37: #{tpu_custom_call.1} parent=1 // pred_fallthru
      _
    %134 = vsyncpa [#allocation3], 1
    %135 = vsyncpa [#allocation6], 1
    %136 = vsyncpa [#allocation4], 1

</llo_original>
